<compile_context>
chip_gen: v7x
topology: tpu7x:2x2x1
jax: 0.10.0
libtpu: 0.0.40
codegen_flags: <defaults>
</compile_context>

<pallas_src>
import jax
import jax.numpy as jnp
from jax.experimental import pallas as pl
from jax.experimental.pallas import tpu as pltpu


def _round_up(x, m):
    return ((x + m - 1) // m) * m


def _affine_kernel(x_ref, w_ref, b_ref, o_ref):
    x = x_ref[...]
    if x.dtype != jnp.bfloat16:
        # In-kernel cast: VALU has huge slack here and this avoids a separate
        # wrapper-side f32->bf16 HBM pass over x.
        x = x.astype(jnp.bfloat16)
    acc = jnp.dot(x, w_ref[...], preferred_element_type=jnp.float32)  # MXU, f32 acc
    o_ref[...] = (acc + b_ref[...]).astype(o_ref.dtype)               # f32 bias add


def prepare_params(w1_t, b1, w2_t, b2, *, lane_pad=128):
    """One-time (parameter-load-time) prep. Do NOT call per forward pass.

    Collapses fc1->fc2 into a single affine map (exact: no activation in the
    module), zero-pads the class dim to 128 (lane-dense unmasked stores), and
    casts the collapsed weight to bf16. Bias stays f32.
    """
    num_class = w2_t.shape[1]
    w = w1_t.astype(jnp.float32) @ w2_t.astype(jnp.float32)                 # (Din, C)
    b = b1.astype(jnp.float32) @ w2_t.astype(jnp.float32) + b2.astype(jnp.float32)
    c_pad = max(lane_pad, _round_up(num_class, lane_pad))
    w = jnp.pad(w, ((0, 0), (0, c_pad - num_class))).astype(jnp.bfloat16)   # (Din, 128)
    b = jnp.pad(b, ((0, 0), (0, c_pad - num_class)))                        # (1, 128) f32
    return w, b, num_class


def classifier_forward(x, w_bf, b_pad, num_class, *, tb=None, out_dtype=jnp.float32):
    """y = (x @ w1_t + b1) @ w2_t + b2, using the pre-collapsed (w_bf, b_pad).

    x: (B, Din).  w_bf: (Din, 128) bf16.  b_pad: (1, 128) f32.
    """
    B, Din = x.shape
    c_pad = w_bf.shape[1]

    # --- Batch tile: large enough to amortize ~0.35us/step, but for big
    # --- batches capped so the grid has >=2 steps (v7x has 2 TensorCores).
    if tb is None:
        b8 = _round_up(B, 8)
        if b8 >= 512:
            tb = min(1024, _round_up(pl.cdiv(b8, 2), 8))
        else:
            tb = b8  # single step; tiny batches are launch-overhead bound anyway
    tb = max(8, _round_up(tb, 8))

    grid = (pl.cdiv(B, tb),)  # ragged tail block handled (masked) by Pallas

    cost = pl.CostEstimate(
        flops=2 * B * Din * c_pad,
        transcendentals=0,
        bytes_accessed=(x.size * x.dtype.itemsize
                        + w_bf.size * 2 + b_pad.size * 4
                        + B * c_pad * jnp.dtype(out_dtype).itemsize),
    )

    out = pl.pallas_call(
        _affine_kernel,
        out_shape=jax.ShapeDtypeStruct((B, c_pad), out_dtype),
        grid_spec=pltpu.PrefetchScalarGridSpec(
            num_scalar_prefetch=0,
            grid=grid,
            in_specs=[
                pl.BlockSpec((tb, Din), lambda i: (i, 0)),      # x tile (native dtype)
                pl.BlockSpec((Din, c_pad), lambda i: (0, 0)),   # collapsed W, VMEM-resident
                pl.BlockSpec((1, c_pad), lambda i: (0, 0)),     # collapsed bias, VMEM-resident
            ],
            out_specs=pl.BlockSpec((tb, c_pad), lambda i: (i, 0)),
        ),
        compiler_params=pltpu.CompilerParams(
            dimension_semantics=("parallel",),
        ),
        cost_estimate=cost,
    )(x, w_bf, b_pad)

    # Under jit this slice fuses with the consumer; callers that can consume
    # the padded (B, 128) logits directly should skip it entirely.
    return out[:, :num_class]


def init_params(key, input_dim, hidden_dim, num_class):
    """Deterministic synthetic init matching nn.Linear parameter shapes.

    PyTorch nn.Linear(in, out) holds W (out, in), b (out,); y = x @ W.T + b.
    We generate in PyTorch layout then transpose.
    """
    k1, k2, k3, k4 = jax.random.split(key, 4)
    lim1 = 1.0 / jnp.sqrt(input_dim)
    lim2 = 1.0 / jnp.sqrt(hidden_dim)
    w1 = jax.random.uniform(k1, (hidden_dim, input_dim), jnp.float32, -lim1, lim1)
    b1 = jax.random.uniform(k2, (hidden_dim,), jnp.float32, -lim1, lim1)
    w2 = jax.random.uniform(k3, (num_class, hidden_dim), jnp.float32, -lim2, lim2)
    b2 = jax.random.uniform(k4, (num_class,), jnp.float32, -lim2, lim2)
    return w1.T, b1.reshape(1, -1), w2.T, b2.reshape(1, -1)


if __name__ == "__main__":
    input_dim = 512
    hidden_dim = 256
    num_class = 5
    batch = 16

    key = jax.random.PRNGKey(0)
    k_x, k_p = jax.random.split(key)
    x = jax.random.normal(k_x, (batch, input_dim), jnp.float32)
    w1_t, b1, w2_t, b2 = init_params(k_p, input_dim, hidden_dim, num_class)

    # One-time weight prep, hoisted out of the per-call path.
    w_bf, b_pad, nc = prepare_params(w1_t, b1, w2_t, b2)

    # jit the forward so the trailing [:, :num_class] slice fuses downstream
    # instead of being a standalone HBM pass.  Default-tb path (per review).
    fwd = jax.jit(lambda xx: classifier_forward(xx, w_bf, b_pad, nc))
    out = jax.block_until_ready(fwd(x))
    assert out.shape == (batch, num_class)

    # Same-precision reference (collapsed affine, bf16 x/W, f32 accumulate):
    # tight tolerance, isolates kernel correctness.
    w_c = w1_t @ w2_t
    b_c = b1 @ w2_t + b2
    ref_same = jnp.dot(x.astype(jnp.bfloat16), w_c.astype(jnp.bfloat16),
                       preferred_element_type=jnp.float32) + b_c
    assert jnp.allclose(out, ref_same, atol=1e-4, rtol=1e-4)

    # Full-precision two-layer reference (exact PyTorch module math):
    # looser tolerance accounts for the bf16 quantization of x and W.
    ref_f32 = (x @ w1_t + b1) @ w2_t + b2
    assert jnp.allclose(out, ref_f32, atol=2e-2, rtol=2e-2)

    # Ragged-batch path (B % tb != 0): cdiv grid + masked tail block.
    x2 = jax.random.normal(jax.random.PRNGKey(1), (20, input_dim), jnp.float32)
    out2 = jax.block_until_ready(classifier_forward(x2, w_bf, b_pad, nc, tb=8))
    ref2 = (x2 @ w1_t + b1) @ w2_t + b2
    assert out2.shape == (20, num_class)
    assert jnp.allclose(out2, ref2, atol=2e-2, rtol=2e-2)

    print("KERNEL_OK")
</pallas_src>

<mosaic_0001>
module attributes {stable_mosaic.version = 11 : i64} {
  func.func @_affine_kernel(%arg0: i32, %arg1: memref<16x512xf32, #tpu.memory_space<vmem>>, %arg2: memref<512x128xbf16, #tpu.memory_space<vmem>>, %arg3: memref<1x128xf32, #tpu.memory_space<vmem>>, %arg4: memref<16x128xf32, #tpu.memory_space<vmem>>) attributes {dimension_semantics = [#tpu.dimension_semantics<parallel>], iteration_bounds = array<i64: 1>, scalar_prefetch = 0 : i64, scratch_operands = 0 : i64, tpu.core_type = #tpu.core_type<tc>, window_params = [{transform_indices = @transform_0, window_bounds = array<i64: 16, 512>}, {pipeline_mode = #tpu.pipeline_mode<synchronous>, transform_indices = @transform_1, window_bounds = array<i64: 512, 128>}, {pipeline_mode = #tpu.pipeline_mode<synchronous>, transform_indices = @transform_2, window_bounds = array<i64: 1, 128>}, {transform_indices = @transform_3, window_bounds = array<i64: 16, 128>}]} {
    %c0 = arith.constant 0 : index
    %c0_0 = arith.constant 0 : index
    %0 = vector.load %arg1[%c0, %c0_0] : memref<16x512xf32, #tpu.memory_space<vmem>>, vector<16x512xf32>
    %1 = arith.truncf %0 : vector<16x512xf32> to vector<16x512xbf16>
    %c0_1 = arith.constant 0 : index
    %c0_2 = arith.constant 0 : index
    %2 = vector.load %arg2[%c0_1, %c0_2] : memref<512x128xbf16, #tpu.memory_space<vmem>>, vector<512x128xbf16>
    %cst = arith.constant dense<0.000000e+00> : vector<16x128xf32>
    %3 = tpu.matmul %1, %2, %cst {dimension_numbers = #tpu.dot_dimension_numbers<[1], [0], [0], [1], [0, 0, 1, 1], [], []>} : vector<16x512xbf16>, vector<512x128xbf16>, vector<16x128xf32> -> vector<16x128xf32>
    %c0_3 = arith.constant 0 : index
    %c0_4 = arith.constant 0 : index
    %4 = vector.load %arg3[%c0_3, %c0_4] : memref<1x128xf32, #tpu.memory_space<vmem>>, vector<1x128xf32>
    %5 = vector.broadcast %4 : vector<1x128xf32> to vector<16x128xf32>
    %6 = arith.addf %3, %5 : vector<16x128xf32>
    %c0_5 = arith.constant 0 : index
    %c0_6 = arith.constant 0 : index
    %7 = vector.load %arg4[%c0_5, %c0_6] : memref<16x128xf32, #tpu.memory_space<vmem>>, vector<16x128xf32>
    tpu.vector_store %arg4[%c0_5, %c0_6], %6 {strides = array<i32>} : memref<16x128xf32, #tpu.memory_space<vmem>>, vector<16x128xf32>,
    return
  }
  func.func @transform_0(%arg0: i32) -> (i32, i32) {
    %c0_i32 = arith.constant 0 : i32
    %c0_i32_0 = arith.constant 0 : i32
    return %arg0, %c0_i32 : i32, i32
  }
  func.func @transform_1(%arg0: i32) -> (i32, i32) {
    %c0_i32 = arith.constant 0 : i32
    %c0_i32_0 = arith.constant 0 : i32
    %c0_i32_1 = arith.constant 0 : i32
    return %c0_i32, %c0_i32_0 : i32, i32
  }
  func.func @transform_2(%arg0: i32) -> (i32, i32) {
    %c0_i32 = arith.constant 0 : i32
    %c0_i32_0 = arith.constant 0 : i32
    %c0_i32_1 = arith.constant 0 : i32
    return %c0_i32, %c0_i32_0 : i32, i32
  }
  func.func @transform_3(%arg0: i32) -> (i32, i32) {
    %c0_i32 = arith.constant 0 : i32
    %c0_i32_0 = arith.constant 0 : i32
    return %arg0, %c0_i32 : i32, i32
  }
}

</mosaic_0001>

<llo_original>
// kernel: _lambda_.1
$region0: #{_lambda_.1}
  #allocation0 [shape = 'u32[]', space=smem, size = 0x4, offset = 0x4, fixed_abs, tag = 'smem constant byte address 0x4 - core index']
  #allocation1 [shape = 'u32[144,128]{1,0:T(1,128)}', space=vmem, size = 0x12000, scoped, tag = 'internal scratch']
  %s0 = inlined_call_operand.hbm [shape: f32[16,512], index: 0, kind: input, shape index: {}]
  %s1 = inlined_call_operand.hbm [shape: bf16[512,128], index: 1, kind: input, shape index: {}]
  %s2 = inlined_call_operand.vmem [shape: f32[1,128], index: 2, kind: input, shape index: {}]
  %s3 = inlined_call_operand.vmem [shape: f32[16,128], index: 3, kind: output, shape index: {}]
  %s4 = sld [smem:[#allocation0]]
  $region30: #{_lambda_.1} parent=0
    _
  %s6 = ssub.s32 1, %s4
  %s7 = scalar_select 0, %s6, %s4
  $region1: #{_lambda_.1} parent=0
    #allocation2 [shape = 'u8[32768]{0}', space=vmem, size = 0x8000, scoped, tag = 'input window, operand 0, single buffered']
    #allocation3 [shape = 's32[1]{0}', space=sflag, size = 0x4, scoped, tag = 'scoped memory for _lambda_.1']
    #allocation4 [shape = 'u8[131072]{0}', space=vmem, size = 0x20000, scoped, tag = 'input window, operand 1, single buffered']
    #allocation5 [shape = 's32[1]{0}', space=sflag, size = 0x4, scoped, tag = 'scoped memory for _lambda_.1']
    %8 = vsyncpa [#allocation3], 0
    %9 = vsyncpa [#allocation5], 0
    // Predicated region
    $region2: #{_lambda_.1} parent=1 // pred_check
      _
    $region3: #{_lambda_.1} parent=1 // pred_check_branch
      %11 = sbr.rel (0) target = $region5
    $region4: #{_lambda_.1} parent=1 // pred_region
      %s13 = ssub.s32 1024, 1024
      %14 = vsyncadd [#allocation3], %s13
      %s15 = sshll.u32 [#allocation2], 4
      %s16 = int_to_ptr.vmem [resolvable:$true] %s15
      %21 = dma.hbm_to_vmem [thread:$0]  %s0, 1024, %s16, [#allocation3], 512, 512, 32
    $region5: #{_lambda_.1} parent=1 // pred_fallthru
      _
    // Predicated region
    $region6: #{_lambda_.1} parent=1 // pred_check
      _
    $region7: #{_lambda_.1} parent=1 // pred_check_branch
      %23 = sbr.rel (0) target = $region9
    $region8: #{_lambda_.1} parent=1 // pred_region
      %s25 = ssub.s32 4096, 4096
      %26 = vsyncadd [#allocation5], %s25
      %s27 = sshll.u32 [#allocation4], 4
      %s28 = int_to_ptr.vmem [resolvable:$true] %s27
      %33 = dma.hbm_to_vmem [thread:$0]  %s1, 4096, %s28, [#allocation5], 64, 64, 4
    $region9: #{_lambda_.1} parent=1 // pred_fallthru
      _
    // Predicated region
    $region10: #{_lambda_.1} parent=1 // pred_check
      _
    $region11: #{_lambda_.1} parent=1 // pred_check_branch
      %35 = sbr.rel (0) target = $region13
    $region12: #{_lambda_.1} parent=1 // pred_region
      _
    $region13: #{_lambda_.1} parent=1 // pred_fallthru
      _
    // Predicated region
    $region14: #{_lambda_.1} parent=1 // pred_check
      _
    $region15: #{_lambda_.1} parent=1 // pred_check_branch
      %37 = sbr.rel (0) target = $region17
    $region16: #{_lambda_.1} parent=1 // pred_region
      %38 = dma.done [#allocation3], 1024
    $region17: #{_lambda_.1} parent=1 // pred_fallthru
      _
    // Predicated region
    $region18: #{_lambda_.1} parent=1 // pred_check
      _
    $region19: #{_lambda_.1} parent=1 // pred_check_branch
      %40 = sbr.rel (0) target = $region21
    $region20: #{_lambda_.1} parent=1 // pred_region
      %41 = dma.done [#allocation5], 4096
    $region21: #{_lambda_.1} parent=1 // pred_fallthru
      _
    %v43 = vld [vmem:[#allocation2] sm:$0xff]
    %v44 = vld [vmem:[#allocation2 + $0x8] sm:$0xff]
    %v45 = vld [vmem:[#allocation2 + $0x10] sm:$0xff]
    %v46 = vld [vmem:[#allocation2 + $0x18] sm:$0xff]
    %v47 = vld [vmem:[#allocation2 + $0x20] sm:$0xff]
    %v48 = vld [vmem:[#allocation2 + $0x28] sm:$0xff]
    %v49 = vld [vmem:[#allocation2 + $0x30] sm:$0xff]
    %v50 = vld [vmem:[#allocation2 + $0x38] sm:$0xff]
    %v51 = vpack.c.bf16 %v47, %v43
    %v52 = vpack.c.bf16 %v48, %v44
    %v53 = vpack.c.bf16 %v49, %v45
    %v54 = vpack.c.bf16 %v50, %v46
    %v55 = vld [vmem:[#allocation4] sm:$0xf]
    %v56 = vld [vmem:[#allocation4 + $0x4] sm:$0xf]
    %v57 = vld [vmem:[#allocation4 + $0x8] sm:$0xf]
    %v58 = vld [vmem:[#allocation4 + $0xc] sm:$0xf]
    %v59 = vld [vmem:[#allocation4 + $0x10] sm:$0xf]
    %v60 = vld [vmem:[#allocation4 + $0x14] sm:$0xf]
    %v61 = vld [vmem:[#allocation4 + $0x18] sm:$0xf]
    %v62 = vld [vmem:[#allocation4 + $0x1c] sm:$0xf]
    %v63 = vld [vmem:[#allocation4 + $0x20] sm:$0xf]
    %v64 = vld [vmem:[#allocation4 + $0x24] sm:$0xf]
    %v65 = vld [vmem:[#allocation4 + $0x28] sm:$0xf]
    %v66 = vld [vmem:[#allocation4 + $0x2c] sm:$0xf]
    %v67 = vld [vmem:[#allocation4 + $0x30] sm:$0xf]
    %v68 = vld [vmem:[#allocation4 + $0x34] sm:$0xf]
    %v69 = vld [vmem:[#allocation4 + $0x38] sm:$0xf]
    %v70 = vld [vmem:[#allocation4 + $0x3c] sm:$0xf]
    %v71 = vld [vmem:[#allocation4 + $0x40] sm:$0xf]
    %v72 = vld [vmem:[#allocation4 + $0x44] sm:$0xf]
    %v73 = vld [vmem:[#allocation4 + $0x48] sm:$0xf]
    %v74 = vld [vmem:[#allocation4 + $0x4c] sm:$0xf]
    %v75 = vld [vmem:[#allocation4 + $0x50] sm:$0xf]
    %v76 = vld [vmem:[#allocation4 + $0x54] sm:$0xf]
    %v77 = vld [vmem:[#allocation4 + $0x58] sm:$0xf]
    %v78 = vld [vmem:[#allocation4 + $0x5c] sm:$0xf]
    %v79 = vld [vmem:[#allocation4 + $0x60] sm:$0xf]
    %v80 = vld [vmem:[#allocation4 + $0x64] sm:$0xf]
    %v81 = vld [vmem:[#allocation4 + $0x68] sm:$0xf]
    %v82 = vld [vmem:[#allocation4 + $0x6c] sm:$0xf]
    %v83 = vld [vmem:[#allocation4 + $0x70] sm:$0xf]
    %v84 = vld [vmem:[#allocation4 + $0x74] sm:$0xf]
    %v85 = vld [vmem:[#allocation4 + $0x78] sm:$0xf]
    %v86 = vld [vmem:[#allocation4 + $0x7c] sm:$0xf]
    %v87 = vld [vmem:[#allocation4 + $0x80] sm:$0xf]
    %v88 = vld [vmem:[#allocation4 + $0x84] sm:$0xf]
    %v89 = vld [vmem:[#allocation4 + $0x88] sm:$0xf]
    %v90 = vld [vmem:[#allocation4 + $0x8c] sm:$0xf]
    %v91 = vld [vmem:[#allocation4 + $0x90] sm:$0xf]
    %v92 = vld [vmem:[#allocation4 + $0x94] sm:$0xf]
    %v93 = vld [vmem:[#allocation4 + $0x98] sm:$0xf]
    %v94 = vld [vmem:[#allocation4 + $0x9c] sm:$0xf]
    %v95 = vld [vmem:[#allocation4 + $0xa0] sm:$0xf]
    %v96 = vld [vmem:[#allocation4 + $0xa4] sm:$0xf]
    %v97 = vld [vmem:[#allocation4 + $0xa8] sm:$0xf]
    %v98 = vld [vmem:[#allocation4 + $0xac] sm:$0xf]
    %v99 = vld [vmem:[#allocation4 + $0xb0] sm:$0xf]
    %v100 = vld [vmem:[#allocation4 + $0xb4] sm:$0xf]
    %v101 = vld [vmem:[#allocation4 + $0xb8] sm:$0xf]
    %v102 = vld [vmem:[#allocation4 + $0xbc] sm:$0xf]
    %v103 = vld [vmem:[#allocation4 + $0xc0] sm:$0xf]
    %v104 = vld [vmem:[#allocation4 + $0xc4] sm:$0xf]
    %v105 = vld [vmem:[#allocation4 + $0xc8] sm:$0xf]
    %v106 = vld [vmem:[#allocation4 + $0xcc] sm:$0xf]
    %v107 = vld [vmem:[#allocation4 + $0xd0] sm:$0xf]
    %v108 = vld [vmem:[#allocation4 + $0xd4] sm:$0xf]
    %v109 = vld [vmem:[#allocation4 + $0xd8] sm:$0xf]
    %v110 = vld [vmem:[#allocation4 + $0xdc] sm:$0xf]
    %v111 = vld [vmem:[#allocation4 + $0xe0] sm:$0xf]
    %v112 = vld [vmem:[#allocation4 + $0xe4] sm:$0xf]
    %v113 = vld [vmem:[#allocation4 + $0xe8] sm:$0xf]
    %v114 = vld [vmem:[#allocation4 + $0xec] sm:$0xf]
    %v115 = vld [vmem:[#allocation4 + $0xf0] sm:$0xf]
    %v116 = vld [vmem:[#allocation4 + $0xf4] sm:$0xf]
    %v117 = vld [vmem:[#allocation4 + $0xf8] sm:$0xf]
    %v118 = vld [vmem:[#allocation4 + $0xfc] sm:$0xf]
    %v119 = vld [vmem:[%s2] sm:$0x1]
    %v121 = vlaneseq
    %v122 = vshrl.u32 %v121, 7
    %v123 = vsub.s32 0, %v122
    %v124 = vrot.slane %v119, %v123
    %v190 = vunpack.c.l.b16 %v55
    %v191 = vunpack.c.l.b16 %v56
    %v192 = vunpack.c.l.b16 %v57
    %v193 = vunpack.c.l.b16 %v58
    %v194 = vunpack.c.l.b16 %v59
    %v195 = vunpack.c.l.b16 %v60
    %v196 = vunpack.c.l.b16 %v61
    %v197 = vunpack.c.l.b16 %v62
    %v198 = vunpack.c.l.b16 %v63
    %v199 = vunpack.c.l.b16 %v64
    %v200 = vunpack.c.l.b16 %v65
    %v201 = vunpack.c.l.b16 %v66
    %v202 = vunpack.c.l.b16 %v67
    %v203 = vunpack.c.l.b16 %v68
    %v204 = vunpack.c.l.b16 %v69
    %v205 = vunpack.c.l.b16 %v70
    %v206 = vunpack.c.l.b16 %v71
    %v207 = vunpack.c.l.b16 %v72
    %v208 = vunpack.c.l.b16 %v73
    %v209 = vunpack.c.l.b16 %v74
    %v210 = vunpack.c.l.b16 %v75
    %v211 = vunpack.c.l.b16 %v76
    %v212 = vunpack.c.l.b16 %v77
    %v213 = vunpack.c.l.b16 %v78
    %v214 = vunpack.c.l.b16 %v79
    %v215 = vunpack.c.l.b16 %v80
    %v216 = vunpack.c.l.b16 %v81
    %v217 = vunpack.c.l.b16 %v82
    %v218 = vunpack.c.l.b16 %v83
    %v219 = vunpack.c.l.b16 %v84
    %v220 = vunpack.c.l.b16 %v85
    %v221 = vunpack.c.l.b16 %v86
    %v222 = vunpack.c.l.b16 %v87
    %v223 = vunpack.c.l.b16 %v88
    %v224 = vunpack.c.l.b16 %v89
    %v225 = vunpack.c.l.b16 %v90
    %v226 = vunpack.c.l.b16 %v91
    %v227 = vunpack.c.l.b16 %v92
    %v228 = vunpack.c.l.b16 %v93
    %v229 = vunpack.c.l.b16 %v94
    %v230 = vunpack.c.l.b16 %v95
    %v231 = vunpack.c.l.b16 %v96
    %v232 = vunpack.c.l.b16 %v97
    %v233 = vunpack.c.l.b16 %v98
    %v234 = vunpack.c.l.b16 %v99
    %v235 = vunpack.c.l.b16 %v100
    %v236 = vunpack.c.l.b16 %v101
    %v237 = vunpack.c.l.b16 %v102
    %v238 = vunpack.c.l.b16 %v103
    %v239 = vunpack.c.l.b16 %v104
    %v240 = vunpack.c.l.b16 %v105
    %v241 = vunpack.c.l.b16 %v106
    %v242 = vunpack.c.l.b16 %v107
    %v243 = vunpack.c.l.b16 %v108
    %v244 = vunpack.c.l.b16 %v109
    %v245 = vunpack.c.l.b16 %v110
    %v246 = vunpack.c.l.b16 %v111
    %v247 = vunpack.c.l.b16 %v112
    %v248 = vunpack.c.l.b16 %v113
    %v249 = vunpack.c.l.b16 %v114
    %v250 = vunpack.c.l.b16 %v115
    %v251 = vunpack.c.l.b16 %v116
    %v252 = vunpack.c.l.b16 %v117
    %v253 = vunpack.c.l.b16 %v118
    %v254 = vpack.c.b16 %v191, %v190
    %v255 = vpack.c.b16 %v193, %v192
    %v256 = vpack.c.b16 %v195, %v194
    %v257 = vpack.c.b16 %v197, %v196
    %v258 = vpack.c.b16 %v199, %v198
    %v259 = vpack.c.b16 %v201, %v200
    %v260 = vpack.c.b16 %v203, %v202
    %v261 = vpack.c.b16 %v205, %v204
    %v262 = vpack.c.b16 %v207, %v206
    %v263 = vpack.c.b16 %v209, %v208
    %v264 = vpack.c.b16 %v211, %v210
    %v265 = vpack.c.b16 %v213, %v212
    %v266 = vpack.c.b16 %v215, %v214
    %v267 = vpack.c.b16 %v217, %v216
    %v268 = vpack.c.b16 %v219, %v218
    %v269 = vpack.c.b16 %v221, %v220
    %v270 = vpack.c.b16 %v223, %v222
    %v271 = vpack.c.b16 %v225, %v224
    %v272 = vpack.c.b16 %v227, %v226
    %v273 = vpack.c.b16 %v229, %v228
    %v274 = vpack.c.b16 %v231, %v230
    %v275 = vpack.c.b16 %v233, %v232
    %v276 = vpack.c.b16 %v235, %v234
    %v277 = vpack.c.b16 %v237, %v236
    %v278 = vpack.c.b16 %v239, %v238
    %v279 = vpack.c.b16 %v241, %v240
    %v280 = vpack.c.b16 %v243, %v242
    %v281 = vpack.c.b16 %v245, %v244
    %v282 = vpack.c.b16 %v247, %v246
    %v283 = vpack.c.b16 %v249, %v248
    %v284 = vpack.c.b16 %v251, %v250
    %v285 = vpack.c.b16 %v253, %v252
    %318 = vmatprep.subr.bf16.mxu0 0
    %319 = vmatpush1.bf16.msra.mxu0 %v254
    %320 = vmatprep.subr.bf16.mxu0 0
    %321 = vmatpush1.bf16.msra.mxu0 %v255
    %322 = vmatprep.subr.bf16.mxu0 0
    %323 = vmatpush1.bf16.msra.mxu0 %v256
    %324 = vmatprep.subr.bf16.mxu0 0
    %325 = vmatpush1.bf16.msra.mxu0 %v257
    %326 = vmatprep.subr.bf16.mxu0 0
    %327 = vmatpush1.bf16.msra.mxu0 %v258
    %328 = vmatprep.subr.bf16.mxu0 0
    %329 = vmatpush1.bf16.msra.mxu0 %v259
    %330 = vmatprep.subr.bf16.mxu0 0
    %331 = vmatpush1.bf16.msra.mxu0 %v260
    %332 = vmatprep.subr.bf16.mxu0 0
    %333 = vmatpush1.bf16.msra.mxu0 %v261
    %334 = vmatprep.subr.bf16.mxu0 0
    %335 = vmatpush1.bf16.msra.mxu0 %v262
    %336 = vmatprep.subr.bf16.mxu0 0
    %337 = vmatpush1.bf16.msra.mxu0 %v263
    %338 = vmatprep.subr.bf16.mxu0 0
    %339 = vmatpush1.bf16.msra.mxu0 %v264
    %340 = vmatprep.subr.bf16.mxu0 0
    %341 = vmatpush1.bf16.msra.mxu0 %v265
    %342 = vmatprep.subr.bf16.mxu0 0
    %343 = vmatpush1.bf16.msra.mxu0 %v266
    %344 = vmatprep.subr.bf16.mxu0 0
    %345 = vmatpush1.bf16.msra.mxu0 %v267
    %346 = vmatprep.subr.bf16.mxu0 0
    %347 = vmatpush1.bf16.msra.mxu0 %v268
    %348 = vmatprep.subr.bf16.mxu0 0
    %349 = vmatpush1.bf16.msra.mxu0 %v269
    %350 = vmatprep.mubr.bf16.mxu0 %v52
    %351 = vmatmul.mubr.bf16.gmra.mrb[0].mxu0 %v51
    %v352 = vpop.f32.mrb[0].mxu0
    %v353 = vadd.f32 %v124, %v352
    %v354 = vpop.f32.mrb[0].mxu0
    %v355 = vpop.f32.mrb[0].mxu0
    %v356 = vadd.f32 %v124, %v355
    %v357 = vpop.f32.mrb[0].mxu0
    %358 = vdwg.mxu0
    %359 = vmatprep.subr.bf16.mxu0 0
    %360 = vmatpush1.bf16.msra.mxu0 %v270
    %361 = vmatprep.subr.bf16.mxu0 0
    %362 = vmatpush1.bf16.msra.mxu0 %v271
    %363 = vmatprep.subr.bf16.mxu0 0
    %364 = vmatpush1.bf16.msra.mxu0 %v272
    %365 = vmatprep.subr.bf16.mxu0 0
    %366 = vmatpush1.bf16.msra.mxu0 %v273
    %367 = vmatprep.subr.bf16.mxu0 0
    %368 = vmatpush1.bf16.msra.mxu0 %v274
    %369 = vmatprep.subr.bf16.mxu0 0
    %370 = vmatpush1.bf16.msra.mxu0 %v275
    %371 = vmatprep.subr.bf16.mxu0 0
    %372 = vmatpush1.bf16.msra.mxu0 %v276
    %373 = vmatprep.subr.bf16.mxu0 0
    %374 = vmatpush1.bf16.msra.mxu0 %v277
    %375 = vmatprep.subr.bf16.mxu0 0
    %376 = vmatpush1.bf16.msra.mxu0 %v278
    %377 = vmatprep.subr.bf16.mxu0 0
    %378 = vmatpush1.bf16.msra.mxu0 %v279
    %379 = vmatprep.subr.bf16.mxu0 0
    %380 = vmatpush1.bf16.msra.mxu0 %v280
    %381 = vmatprep.subr.bf16.mxu0 0
    %382 = vmatpush1.bf16.msra.mxu0 %v281
    %383 = vmatprep.subr.bf16.mxu0 0
    %384 = vmatpush1.bf16.msra.mxu0 %v282
    %385 = vmatprep.subr.bf16.mxu0 0
    %386 = vmatpush1.bf16.msra.mxu0 %v283
    %387 = vmatprep.subr.bf16.mxu0 0
    %388 = vmatpush1.bf16.msra.mxu0 %v284
    %389 = vmatprep.subr.bf16.mxu0 0
    %390 = vmatpush1.bf16.msra.mxu0 %v285
    %391 = vmatprep.mubr.bf16.mxu0 %v54
    %392 = vmatmul.mubr.bf16.gmra.mrb[0].mxu0 %v53
    %v393 = vpop.f32.mrb[0].mxu0
    %v394 = vadd.f32 %v353, %v393
    %v395 = vpop.f32.mrb[0].mxu0
    %v396 = vpop.f32.mrb[0].mxu0
    %v397 = vadd.f32 %v356, %v396
    %v398 = vpop.f32.mrb[0].mxu0
    %399 = vdwg.mxu0
    %400 = vst [vmem:[%s3] sm:$0xff] %v394
    %401 = vst [vmem:[%s3 + $0x8] sm:$0xff] %v397
    // Predicated region
    $region22: #{_lambda_.1} parent=1 // pred_check
      _
    $region23: #{_lambda_.1} parent=1 // pred_check_branch
      %403 = sbr.rel (0) target = $region25
    $region24: #{_lambda_.1} parent=1 // pred_region
      _
    $region25: #{_lambda_.1} parent=1 // pred_fallthru
      _
    // Predicated region
    $region26: #{_lambda_.1} parent=1 // pred_check
      _
    $region27: #{_lambda_.1} parent=1 // pred_check_branch
      %405 = sbr.rel (0) target = $region29
    $region28: #{_lambda_.1} parent=1 // pred_region
      _
    $region29: #{_lambda_.1} parent=1 // pred_fallthru
      _
    %406 = vsyncpa [#allocation3], 1
    %407 = vsyncpa [#allocation5], 1

</llo_original>
